<compile_context>
chip_gen: v6e
topology: v6e:2x2x1
jax: 0.10.0
libtpu: 0.0.40
codegen_flags: <defaults>
</compile_context>

<pallas_src>
import numpy as np
import jax
import jax.numpy as jnp
from jax.experimental import pallas as pl
from jax.experimental.pallas import tpu as pltpu


def _nlin_kernel(x_ref, w1_ref, w2_ref, o_ref):
    # x_ref : (tm, K)  lane-packed input rows (K = k_pack * 2c)
    # w1_ref: (K, K)   I_k (x) W1.T with output columns permuted to
    #                  [all reals | all imags]
    # w2_ref: (4,)     coeff weight W2 flattened row-major, in SMEM
    # o_ref : (tm, K)  output, layout [out_real | out_imag]
    kc = o_ref.shape[1] // 2

    mixed = jnp.dot(x_ref[...], w1_ref[...], preferred_element_type=jnp.float32)

    r = mixed[:, :kc]          # real parts, lane-aligned half
    im = mixed[:, kc:]         # imag parts, lane-aligned half
    amp = r * r + im * im      # |.|^2 on the VPU (no pair-sum matmul)
    nr = amp * r
    ni = amp * im

    # 2x2 coeff as four broadcast FMAs (no block-diagonal matmul).
    w00 = w2_ref[0]
    w01 = w2_ref[1]
    w10 = w2_ref[2]
    w11 = w2_ref[3]
    o_ref[:, :kc] = (w00 * nr + w01 * ni).astype(o_ref.dtype)
    o_ref[:, kc:] = (w10 * nr + w11 * ni).astype(o_ref.dtype)


def linear_external_nlin_core(x, w1, w2, *, lane_target=256, tm_target=1024,
                              operand_dtype=None):
    """x: (b, s, c, 2); w1: (2c, 2c) pre_nlin_mix weight; w2: (2, 2) coeff weight.

    operand_dtype: optionally cast the matmul operands (e.g. jnp.bfloat16 on
    v6e/v7x for bandwidth/MXU throughput); accumulation stays f32.
    """
    b, s, c, two = x.shape
    assert two == 2, "last dim must be 2 (output_size == 2)"
    n = b * s
    d = 2 * c
    dtype = x.dtype

    # ---- lane packing factor: pack k rows into the lane dimension ----------
    if d >= lane_target:
        k = 1
    else:
        k = max(1, lane_target // d)
        k = min(k, max(1, n))
    K = k * d
    kc = k * c

    # ---- row tiling: pick tm from a VMEM budget, pad rows if needed --------
    bytes_per_row = K * 4
    max_tm = max(8, (8 * 1024 * 1024) // (4 * bytes_per_row))   # x+out, 2 bufs
    max_tm = max(8, (max_tm // 8) * 8)
    m_raw = -(-n // k)                                          # packed rows
    if m_raw <= max_tm and m_raw <= tm_target:
        tm = m_raw
        m = m_raw
    else:
        tm = min(tm_target, max_tm)
        m = -(-m_raw // tm) * tm
    n_pad = m * k

    # ---- pack the input -----------------------------------------------------
    x2d = x.reshape(n, d)
    if n_pad != n:
        x2d = jnp.pad(x2d, ((0, n_pad - n), (0, 0)))
    xp = x2d.reshape(m, K)

    # ---- build packed, column-permuted weight ------------------------------
    # W1big_base = I_k (x) W1.T ; then permute output columns so the result is
    # [real(g=0..k-1, ch=0..c-1) | imag(g=0..k-1, ch=0..c-1)].
    w1t = jnp.transpose(w1).astype(dtype)                        # (d, d)
    if k > 1:
        w1big = jnp.kron(jnp.eye(k, dtype=dtype), w1t)           # (K, K)
    else:
        w1big = w1t
    g = np.arange(k).repeat(c)
    ch = np.tile(np.arange(c), k)
    col_perm = np.concatenate([g * d + 2 * ch, g * d + 2 * ch + 1])
    w1big = w1big[:, col_perm]

    if operand_dtype is not None:
        xp = xp.astype(operand_dtype)
        w1big = w1big.astype(operand_dtype)

    w2_flat = w2.reshape(4).astype(jnp.float32)

    # ---- compiler params (raise VMEM limit only if the estimate needs it) ---
    est_bytes = 4 * tm * K * 4 + 2 * K * K * 4 + 2 * 1024 * 1024
    cp_kwargs = dict(dimension_semantics=("parallel",))
    if est_bytes > 12 * 1024 * 1024:
        cp_kwargs["vmem_limit_bytes"] = min(est_bytes + 4 * 1024 * 1024,
                                            48 * 1024 * 1024)
    compiler_params = pltpu.CompilerParams(**cp_kwargs)

    out_p = pl.pallas_call(
        _nlin_kernel,
        out_shape=jax.ShapeDtypeStruct((m, K), dtype),
        grid_spec=pltpu.PrefetchScalarGridSpec(
            num_scalar_prefetch=0,
            grid=(m // tm,),
            in_specs=[
                pl.BlockSpec((tm, K), lambda i: (i, 0)),
                pl.BlockSpec((K, K), lambda i: (0, 0)),
                pl.BlockSpec(memory_space=pltpu.MemorySpace.SMEM),
            ],
            out_specs=pl.BlockSpec((tm, K), lambda i: (i, 0)),
        ),
        compiler_params=compiler_params,
    )(xp, w1big, w2_flat)

    # ---- unpack: [reals | imags] per packed row -> (b, s, c, 2) -------------
    out = out_p.reshape(m, 2, k, c)          # (row_block, part, group, ch)
    out = out.transpose(0, 2, 3, 1)          # (row_block, group, ch, part)
    out = out.reshape(n_pad, c, 2)[:n]
    return out.reshape(b, s, c, 2)


def _reference(x, w1, w2):
    """Pure-JAX mirror of the PyTorch forward."""
    b, s, c, _ = x.shape
    mixed = x.reshape(b * s, c * 2) @ w1.T
    mixed = mixed.reshape(b * s, c, 2)
    amp = mixed[..., 0] ** 2 + mixed[..., 1] ** 2
    nlin = amp[..., None] * mixed
    out = nlin.reshape(b * s * c, 2) @ w2.T
    return out.reshape(b, s, c, 2)


if __name__ == "__main__":
    # Small deterministic shapes: batch=2, seq=8, channels=4, output_size=2.
    b, s, c = 2, 8, 4
    key = jax.random.PRNGKey(0)
    kx, k1, k2 = jax.random.split(key, 3)

    x = jax.random.normal(kx, (b, s, c, 2), dtype=jnp.float32)

    # nn.Linear default init: U(-1/sqrt(fan_in), 1/sqrt(fan_in)), bias=False.
    d = 2 * c
    bound1 = 1.0 / jnp.sqrt(jnp.float32(d))
    bound2 = 1.0 / jnp.sqrt(jnp.float32(2))
    w1 = jax.random.uniform(k1, (d, d), jnp.float32, -bound1, bound1)
    w2 = jax.random.uniform(k2, (2, 2), jnp.float32, -bound2, bound2)

    out = linear_external_nlin_core(x, w1, w2)
    out = jax.block_until_ready(out)

    ref = _reference(x, w1, w2)
    assert out.shape == (b, s, c, 2)
    assert jnp.allclose(out, ref, atol=1e-5, rtol=1e-5), "mismatch vs reference"

    print("KERNEL_OK")
</pallas_src>

<mosaic_0001>
module attributes {stable_mosaic.version = 11 : i64} {
  func.func @_nlin_kernel(%arg0: i32, %arg1: memref<1x128xf32, #tpu.memory_space<vmem>>, %arg2: memref<128x128xf32, #tpu.memory_space<vmem>>, %arg3: memref<4xf32, #tpu.memory_space<smem>>, %arg4: memref<1x128xf32, #tpu.memory_space<vmem>>) attributes {dimension_semantics = [#tpu.dimension_semantics<parallel>], iteration_bounds = array<i64: 1>, scalar_prefetch = 0 : i64, scratch_operands = 0 : i64, tpu.core_type = #tpu.core_type<tc>, window_params = [{transform_indices = @transform_0, window_bounds = array<i64: 1, 128>}, {pipeline_mode = #tpu.pipeline_mode<synchronous>, transform_indices = @transform_1, window_bounds = array<i64: 128, 128>}, {transform_indices = @transform_2, window_bounds = array<i64: 4>}, {transform_indices = @transform_3, window_bounds = array<i64: 1, 128>}]} {
    %c0 = arith.constant 0 : index
    %c0_0 = arith.constant 0 : index
    %0 = vector.load %arg1[%c0, %c0_0] : memref<1x128xf32, #tpu.memory_space<vmem>>, vector<1x128xf32>
    %c0_1 = arith.constant 0 : index
    %c0_2 = arith.constant 0 : index
    %1 = vector.load %arg2[%c0_1, %c0_2] : memref<128x128xf32, #tpu.memory_space<vmem>>, vector<128x128xf32>
    %cst = arith.constant dense<0.000000e+00> : vector<1x128xf32>
    %2 = tpu.matmul %0, %1, %cst {dimension_numbers = #tpu.dot_dimension_numbers<[1], [0], [0], [1], [0, 0, 1, 1], [], []>} : vector<1x128xf32>, vector<128x128xf32>, vector<1x128xf32> -> vector<1x128xf32>
    %3 = vector.extract_strided_slice %2 {offsets = [0, 0], sizes = [1, 64], strides = [1, 1]} : vector<1x128xf32> to vector<1x64xf32>
    %4 = vector.extract_strided_slice %2 {offsets = [0, 64], sizes = [1, 64], strides = [1, 1]} : vector<1x128xf32> to vector<1x64xf32>
    %5 = arith.mulf %3, %3 : vector<1x64xf32>
    %6 = arith.mulf %4, %4 : vector<1x64xf32>
    %7 = arith.addf %5, %6 : vector<1x64xf32>
    %8 = arith.mulf %7, %3 : vector<1x64xf32>
    %9 = arith.mulf %7, %4 : vector<1x64xf32>
    %c0_3 = arith.constant 0 : index
    %10 = memref.load %arg3[%c0_3] : memref<4xf32, #tpu.memory_space<smem>>
    %c1 = arith.constant 1 : index
    %11 = memref.load %arg3[%c1] : memref<4xf32, #tpu.memory_space<smem>>
    %c2 = arith.constant 2 : index
    %12 = memref.load %arg3[%c2] : memref<4xf32, #tpu.memory_space<smem>>
    %c3 = arith.constant 3 : index
    %13 = memref.load %arg3[%c3] : memref<4xf32, #tpu.memory_space<smem>>
    %14 = vector.broadcast %10 : f32 to vector<1x64xf32>
    %15 = arith.mulf %14, %8 : vector<1x64xf32>
    %16 = vector.broadcast %11 : f32 to vector<1x64xf32>
    %17 = arith.mulf %16, %9 : vector<1x64xf32>
    %18 = arith.addf %15, %17 : vector<1x64xf32>
    %c0_4 = arith.constant 0 : index
    %c0_5 = arith.constant 0 : index
    %19 = vector.load %arg4[%c0_4, %c0_5] : memref<1x128xf32, #tpu.memory_space<vmem>>, vector<1x64xf32>
    tpu.vector_store %arg4[%c0_4, %c0_5], %18 {strides = array<i32>} : memref<1x128xf32, #tpu.memory_space<vmem>>, vector<1x64xf32>,
    %20 = vector.broadcast %12 : f32 to vector<1x64xf32>
    %21 = arith.mulf %20, %8 : vector<1x64xf32>
    %22 = vector.broadcast %13 : f32 to vector<1x64xf32>
    %23 = arith.mulf %22, %9 : vector<1x64xf32>
    %24 = arith.addf %21, %23 : vector<1x64xf32>
    %c0_6 = arith.constant 0 : index
    %c64 = arith.constant 64 : index
    %25 = vector.load %arg4[%c0_6, %c64] : memref<1x128xf32, #tpu.memory_space<vmem>>, vector<1x64xf32>
    tpu.vector_store %arg4[%c0_6, %c64], %24 {strides = array<i32>} : memref<1x128xf32, #tpu.memory_space<vmem>>, vector<1x64xf32>,
    return
  }
  func.func @transform_0(%arg0: i32) -> (i32, i32) {
    %c0_i32 = arith.constant 0 : i32
    %c0_i32_0 = arith.constant 0 : i32
    return %arg0, %c0_i32 : i32, i32
  }
  func.func @transform_1(%arg0: i32) -> (i32, i32) {
    %c0_i32 = arith.constant 0 : i32
    %c0_i32_0 = arith.constant 0 : i32
    %c0_i32_1 = arith.constant 0 : i32
    return %c0_i32, %c0_i32_0 : i32, i32
  }
  func.func @transform_2(%arg0: i32) -> i32 {
    %c0_i32 = arith.constant 0 : i32
    %c0_i32_0 = arith.constant 0 : i32
    return %c0_i32 : i32
  }
  func.func @transform_3(%arg0: i32) -> (i32, i32) {
    %c0_i32 = arith.constant 0 : i32
    %c0_i32_0 = arith.constant 0 : i32
    return %arg0, %c0_i32 : i32, i32
  }
}

</mosaic_0001>

<llo_original>
// kernel: tpu_custom_call.1
$region0: #{tpu_custom_call.1}
  #allocation0 [shape = 'u32[]', space=smem, size = 0x4, offset = 0x4, fixed_abs, tag = 'smem constant byte address 0x4 - core index']
  #allocation1 [shape = 'u32[144,128]{1,0:T(1,128)}', space=vmem, size = 0x12000, scoped, tag = 'internal scratch']
  %s0 = inlined_call_operand.hbm [shape: f32[1,128], index: 0, kind: input, shape index: {}]
  %s1 = inlined_call_operand.hbm [shape: f32[128,128], index: 1, kind: input, shape index: {}]
  %s2 = inlined_call_operand.vmem [shape: f32[4], index: 2, kind: input, shape index: {}]
  %s3 = inlined_call_operand.hbm [shape: f32[1,128], index: 3, kind: output, shape index: {}]
  %s4 = sld [smem:[#allocation0]]
  $region34: #{tpu_custom_call.1} parent=0
    _
  %s6 = ssub.s32 1, %s4
  %s7 = scalar_select 0, %s6, %s4
  $region1: #{tpu_custom_call.1} parent=0
    #allocation2 [shape = 'u8[512]{0}', space=vmem, size = 0x400, scoped, tag = 'input window, operand 0, single buffered']
    #allocation3 [shape = 's32[1]{0}', space=sflag, size = 0x4, scoped, tag = 'scoped memory for tpu_custom_call.1']
    #allocation4 [shape = 's32[1]{0}', space=sflag, size = 0x4, scoped, tag = 'scoped memory for tpu_custom_call.1']
    #allocation5 [shape = 's32[1]{0}', space=sflag, size = 0x4, scoped, tag = 'scoped memory for tpu_custom_call.1']
    #allocation6 [shape = 'u8[65536]{0}', space=vmem, size = 0x10000, scoped, tag = 'input window, operand 1, single buffered']
    #allocation7 [shape = 's32[1]{0}', space=sflag, size = 0x4, scoped, tag = 'scoped memory for tpu_custom_call.1']
    #allocation8 [shape = 'u8[512]{0}', space=smem, size = 0x200, scoped, tag = 'input window, operand 2, single buffered']
    #allocation9 [shape = 'u8[512]{0}', space=vmem, size = 0x400, scoped, tag = 'output window, operand 0, single buffered']
    %8 = vsyncpa [#allocation3], 0
    %9 = vsyncpa [#allocation7], 0
    %10 = vsyncpa [#allocation5], 0
    %11 = vsyncpa [#allocation4], 0
    // Predicated region
    $region2: #{tpu_custom_call.1} parent=1 // pred_check
      _
    $region3: #{tpu_custom_call.1} parent=1 // pred_check_branch
      %13 = sbr.rel (0) target = $region5
    $region4: #{tpu_custom_call.1} parent=1 // pred_region
      %s15 = ssub.s32 16, 16
      %16 = vsyncadd [#allocation3], %s15
      %s18 = sshll.u32 [#allocation2], 4
      %s19 = int_to_ptr.vmem [resolvable:$true] %s18
      %21 = dma.hbm_to_vmem [thread:$0]  %s0, 16, %s19, [#allocation3]
    $region5: #{tpu_custom_call.1} parent=1 // pred_fallthru
      _
    // Predicated region
    $region6: #{tpu_custom_call.1} parent=1 // pred_check
      _
    $region7: #{tpu_custom_call.1} parent=1 // pred_check_branch
      %23 = sbr.rel (0) target = $region9
    $region8: #{tpu_custom_call.1} parent=1 // pred_region
      %s25 = ssub.s32 2048, 2048
      %26 = vsyncadd [#allocation7], %s25
      %s27 = sshll.u32 [#allocation6], 4
      %s28 = int_to_ptr.vmem [resolvable:$true] %s27
      %33 = dma.hbm_to_vmem [thread:$0]  %s1, 2048, %s28, [#allocation7], 128, 128, 8
    $region9: #{tpu_custom_call.1} parent=1 // pred_fallthru
      _
    // Predicated region
    $region10: #{tpu_custom_call.1} parent=1 // pred_check
      _
    $region11: #{tpu_custom_call.1} parent=1 // pred_check_branch
      %35 = sbr.rel (0) target = $region13
    $region12: #{tpu_custom_call.1} parent=1 // pred_region
      %s37 = ssub.s32 16, 16
      %38 = vsyncadd [#allocation5], %s37
      %s40 = sshll.u32 %s2, 4
      %s41 = int_to_ptr.vmem [resolvable:$true] %s40
      %43 = dma.vmem_to_smem %s41, 16, [#allocation8], [#allocation5]
    $region13: #{tpu_custom_call.1} parent=1 // pred_fallthru
      _
    // Predicated region
    $region14: #{tpu_custom_call.1} parent=1 // pred_check
      _
    $region15: #{tpu_custom_call.1} parent=1 // pred_check_branch
      %45 = sbr.rel (0) target = $region17
    $region16: #{tpu_custom_call.1} parent=1 // pred_region
      %46 = dma.done [#allocation3], 16
    $region17: #{tpu_custom_call.1} parent=1 // pred_fallthru
      _
    // Predicated region
    $region18: #{tpu_custom_call.1} parent=1 // pred_check
      _
    $region19: #{tpu_custom_call.1} parent=1 // pred_check_branch
      %48 = sbr.rel (0) target = $region21
    $region20: #{tpu_custom_call.1} parent=1 // pred_region
      %49 = dma.done [#allocation7], 2048
    $region21: #{tpu_custom_call.1} parent=1 // pred_fallthru
      _
    // Predicated region
    $region22: #{tpu_custom_call.1} parent=1 // pred_check
      _
    $region23: #{tpu_custom_call.1} parent=1 // pred_check_branch
      %51 = sbr.rel (0) target = $region25
    $region24: #{tpu_custom_call.1} parent=1 // pred_region
      %52 = dma.done [#allocation5], 16
    $region25: #{tpu_custom_call.1} parent=1 // pred_fallthru
      _
    %53 = sfence
    %v54 = vld [vmem:[#allocation2] sm:$0x1]
    %v55 = vld [vmem:[#allocation6] sm:$0xff]
    %v56 = vld [vmem:[#allocation6 + $0x8] sm:$0xff]
    %v57 = vld [vmem:[#allocation6 + $0x10] sm:$0xff]
    %v58 = vld [vmem:[#allocation6 + $0x18] sm:$0xff]
    %v59 = vld [vmem:[#allocation6 + $0x20] sm:$0xff]
    %v60 = vld [vmem:[#allocation6 + $0x28] sm:$0xff]
    %v61 = vld [vmem:[#allocation6 + $0x30] sm:$0xff]
    %v62 = vld [vmem:[#allocation6 + $0x38] sm:$0xff]
    %v63 = vld [vmem:[#allocation6 + $0x40] sm:$0xff]
    %v64 = vld [vmem:[#allocation6 + $0x48] sm:$0xff]
    %v65 = vld [vmem:[#allocation6 + $0x50] sm:$0xff]
    %v66 = vld [vmem:[#allocation6 + $0x58] sm:$0xff]
    %v67 = vld [vmem:[#allocation6 + $0x60] sm:$0xff]
    %v68 = vld [vmem:[#allocation6 + $0x68] sm:$0xff]
    %v69 = vld [vmem:[#allocation6 + $0x70] sm:$0xff]
    %v70 = vld [vmem:[#allocation6 + $0x78] sm:$0xff]
    %71 = vmatprep.subr.mxu0 0.0
    %72 = vmatpush1.msra.mxu0 %v70
    %73 = vmatprep.subr.mxu0 0.0
    %74 = vmatpush1.msra.mxu0 %v69
    %75 = vmatprep.subr.mxu0 0.0
    %76 = vmatpush1.msra.mxu0 %v68
    %77 = vmatprep.subr.mxu0 0.0
    %78 = vmatpush1.msra.mxu0 %v67
    %79 = vmatprep.subr.mxu0 0.0
    %80 = vmatpush1.msra.mxu0 %v66
    %81 = vmatprep.subr.mxu0 0.0
    %82 = vmatpush1.msra.mxu0 %v65
    %83 = vmatprep.subr.mxu0 0.0
    %84 = vmatpush1.msra.mxu0 %v64
    %85 = vmatprep.subr.mxu0 0.0
    %86 = vmatpush1.msra.mxu0 %v63
    %87 = vmatprep.subr.mxu0 0.0
    %88 = vmatpush1.msra.mxu0 %v62
    %89 = vmatprep.subr.mxu0 0.0
    %90 = vmatpush1.msra.mxu0 %v61
    %91 = vmatprep.subr.mxu0 0.0
    %92 = vmatpush1.msra.mxu0 %v60
    %93 = vmatprep.subr.mxu0 0.0
    %94 = vmatpush1.msra.mxu0 %v59
    %95 = vmatprep.subr.mxu0 0.0
    %96 = vmatpush1.msra.mxu0 %v58
    %97 = vmatprep.subr.mxu0 0.0
    %98 = vmatpush1.msra.mxu0 %v57
    %99 = vmatprep.subr.mxu0 0.0
    %100 = vmatpush1.msra.mxu0 %v56
    %101 = vmatprep.subr.mxu0 0.0
    %102 = vmatpush1.msra.mxu0 %v55
    %103 = vmatprep.subr.mxu0 0.0
    %104 = vmatpush2.msra.mxu0 0.0
    %105 = vmatprep.subr.mxu0 0.0
    %106 = vmatpush2.msra.mxu0 0.0
    %107 = vmatprep.subr.mxu0 0.0
    %108 = vmatpush2.msra.mxu0 0.0
    %109 = vmatprep.subr.mxu0 0.0
    %110 = vmatpush2.msra.mxu0 0.0
    %111 = vmatprep.subr.mxu0 0.0
    %112 = vmatpush2.msra.mxu0 0.0
    %113 = vmatprep.subr.mxu0 0.0
    %114 = vmatpush2.msra.mxu0 0.0
    %115 = vmatprep.subr.mxu0 0.0
    %116 = vmatpush2.msra.mxu0 0.0
    %117 = vmatprep.subr.mxu0 0.0
    %118 = vmatpush2.msra.mxu0 0.0
    %119 = vmatprep.subr.mxu0 0.0
    %120 = vmatpush2.msra.mxu0 0.0
    %121 = vmatprep.subr.mxu0 0.0
    %122 = vmatpush2.msra.mxu0 0.0
    %123 = vmatprep.subr.mxu0 0.0
    %124 = vmatpush2.msra.mxu0 0.0
    %125 = vmatprep.subr.mxu0 0.0
    %126 = vmatpush2.msra.mxu0 0.0
    %127 = vmatprep.subr.mxu0 0.0
    %128 = vmatpush2.msra.mxu0 0.0
    %129 = vmatprep.subr.mxu0 0.0
    %130 = vmatpush2.msra.mxu0 0.0
    %131 = vmatprep.subr.mxu0 0.0
    %132 = vmatpush2.msra.mxu0 0.0
    %133 = vmatprep.subr.mxu0 0.0
    %134 = vmatpush2.msra.mxu0 0.0
    %135 = vmatprep.mubr.f32.mxu0 0.0
    %136 = vmatmul.mubr.f32.gmra.mxu0 %v54
    %v137 = vpop.f32.mrf.mxu0
    %v138 = vadd.f32 0.0, %v137
    %v139 = vpop.f32.mrf.mxu0
    %140 = vdwg.mxu0
    %v141 = vmul.f32 %v138, %v138
    %143 = vrot.lane.b32.xlu0 %v141, 64
    %v144 = vpop.permute.xlu0 %143
    %v146 = vadd.f32 %v141, %v144
    %v147 = vmul.f32 %v146, %v138
    %149 = vrot.lane.b32.xlu0 %v138, 64
    %v150 = vpop.permute.xlu0 %149
    %v152 = vmul.f32 %v146, %v150
    %s153 = sld [smem:[#allocation8]]
    %s154 = sld [smem:[#allocation8 + $0x1]]
    %s155 = sld [smem:[#allocation8 + $0x2]]
    %s156 = sld [smem:[#allocation8 + $0x3]]
    %v157 = vstv %s153
    %v158 = vmul.f32 %v157, %v147
    %v159 = vstv %s154
    %v160 = vmul.f32 %v159, %v152
    %v161 = vadd.f32 %v158, %v160
    %vm162 = vcmask 516096
    %163 = vst.msk [vmem:[#allocation9] sm:$0x1] %vm162, %v161
    %v164 = vstv %s155
    %v165 = vmul.f32 %v164, %v147
    %v166 = vstv %s156
    %v167 = vmul.f32 %v166, %v152
    %v168 = vadd.f32 %v165, %v167
    %170 = vrot.lane.b32.xlu0 %v168, 64
    %v171 = vpop.permute.xlu0 %170
    %vm173 = vcmask 1040896
    %174 = vst.msk [vmem:[#allocation9] sm:$0x1] %vm173, %v171
    // Predicated region
    $region26: #{tpu_custom_call.1} parent=1 // pred_check
      _
    $region27: #{tpu_custom_call.1} parent=1 // pred_check_branch
      %176 = sbr.rel (0) target = $region29
    $region28: #{tpu_custom_call.1} parent=1 // pred_region
      %s178 = ssub.s32 16, 16
      %179 = vsyncadd [#allocation4], %s178
      %s181 = sshll.u32 [#allocation9], 4
      %s182 = int_to_ptr.vmem [resolvable:$true] %s181
      %184 = dma.vmem_to_hbm [thread:$0]  %s182, 16, %s3, [#allocation4]
    $region29: #{tpu_custom_call.1} parent=1 // pred_fallthru
      _
    // Predicated region
    $region30: #{tpu_custom_call.1} parent=1 // pred_check
      _
    $region31: #{tpu_custom_call.1} parent=1 // pred_check_branch
      %186 = sbr.rel (0) target = $region33
    $region32: #{tpu_custom_call.1} parent=1 // pred_region
      %187 = dma.done [#allocation4], 16
    $region33: #{tpu_custom_call.1} parent=1 // pred_fallthru
      _
    %188 = vsyncpa [#allocation3], 1
    %189 = vsyncpa [#allocation7], 1
    %190 = vsyncpa [#allocation4], 1
    %191 = vsyncpa [#allocation5], 1

</llo_original>
